<compile_context>
chip_gen: v7x
topology: tpu7x:2x2x1
jax: 0.10.0
libtpu: 0.0.40
codegen_flags: <defaults>
</compile_context>

<pallas_src>
import numpy as np
import jax
import jax.numpy as jnp
from jax.experimental import pallas as pl
from jax.experimental.pallas import tpu as pltpu


def _round_up(x, m):
    return (x + m - 1) // m * m


def _cdiv(a, b):
    return -(-a // b)


def g_addition_kernel(x_ref, w_ref, b_ref, o_ref):
    # x_ref: (1, T*C_in, Q)          channel-major im2col tile (one batch elem, one L tile)
    # w_ref: (stride*C_out, T*C_in)  phase-fused packed weights
    # b_ref: (stride*C_out, 1)       phase-replicated bias (f32)
    # o_ref: (1, stride*C_out, Q)    phase-fused output tile (f32); lane dim = Q (multiple of 128)
    y = jnp.dot(w_ref[...], x_ref[0], preferred_element_type=jnp.float32)
    y = y + b_ref[...]                                  # single bias add (hoisted out of any loop)
    o_ref[0] = jnp.maximum(y, 0.0).astype(o_ref.dtype)  # act = ReLU


def g_addition(x_ncl, weight, bias, *, stride, compute_dtype=jnp.bfloat16,
               l_tile=2048, vmem_budget_bytes=20 * 2**20):
    """x_ncl: (N, C_in, L_in); weight: (C_in, C_out, K) [PyTorch ConvTranspose1d layout];
    bias: (C_out,). Returns (N, C_out, L_out) float32."""
    N, C_in, L_in = x_ncl.shape
    C_in_w, C_out, K = weight.shape
    assert C_in_w == C_in and stride >= 1
    L_out = (L_in - 1) * stride + K

    T = _cdiv(K, stride)           # max taps per phase
    Lq = L_in + T - 1              # rows of the phase-decomposed output
    M = stride * C_out             # fused output-row dim (all phases)
    Kdim = T * C_in                # matmul contraction dim
    dt_size = jnp.dtype(compute_dtype).itemsize

    # --- 128-aligned L tiles that divide Lq near-evenly (limit tail waste) ---
    n_tiles = _cdiv(Lq, max(l_tile, 128))
    Q = _round_up(_cdiv(Lq, n_tiles), 128)

    def _footprint(q):  # double-buffered in/out tiles + (double-buffered) weights/bias
        return 2 * (q * Kdim * dt_size + q * M * 4) + 2 * (M * Kdim * dt_size + M * 4)

    while Q > 128 and _footprint(Q) > vmem_budget_bytes:  # v7x-safe VMEM budget
        Q = max(128, _round_up(Q // 2, 128))
    n_tiles = _cdiv(Lq, Q)
    Lq_pad = n_tiles * Q

    # ---- layout plumbing in plain JAX (no compute hoisted here) ------------
    # Channel-major im2col (x stays in its native (N, C, L) layout):
    #   xcol[n, t*C_in + c, q] = x[n, c, q - t]   (zero outside [0, L_in))
    x = x_ncl.astype(compute_dtype)
    cols = [jnp.pad(x, ((0, 0), (0, 0), (t, Lq_pad - L_in - t))) for t in range(T)]
    xcol = jnp.concatenate(cols, axis=1)                             # (N, T*C_in, Lq_pad)

    # Phase-fused weights: w2[p*C_out + o, t*C_in + c] = weight[c, o, t*stride + p]
    # (zero for taps t*stride + p >= K).
    w_pad = jnp.pad(weight, ((0, 0), (0, 0), (0, T * stride - K)))   # (C_in, C_out, T*stride)
    w2 = jnp.transpose(w_pad.reshape(C_in, C_out, T, stride),
                       (3, 1, 2, 0)).reshape(M, Kdim).astype(compute_dtype)
    # Phase-replicated bias: b2[p*C_out + o] = bias[o]
    b2 = jnp.tile(bias.astype(jnp.float32), stride).reshape(M, 1)

    grid = (N, n_tiles)
    out = pl.pallas_call(
        g_addition_kernel,
        out_shape=jax.ShapeDtypeStruct((N, M, Lq_pad), jnp.float32),
        grid=grid,
        in_specs=[
            pl.BlockSpec((1, Kdim, Q), lambda n, j: (n, 0, j)),
            pl.BlockSpec((M, Kdim), lambda n, j: (0, 0)),
            pl.BlockSpec((M, 1), lambda n, j: (0, 0)),
        ],
        out_specs=pl.BlockSpec((1, M, Q), lambda n, j: (n, 0, j)),
        compiler_params=pltpu.CompilerParams(
            dimension_semantics=("parallel", "parallel"),
            vmem_limit_bytes=32 * 2**20),
    )(xcol, w2, b2)

    # Un-interleave phases (single XLA copy):
    #   out[n, p*C_out + o, q] = y[n, o, q*stride + p]
    y = jnp.transpose(out.reshape(N, stride, C_out, Lq_pad), (0, 2, 3, 1))
    return y.reshape(N, C_out, Lq_pad * stride)[:, :, :L_out]


def _reference_numpy(x, w, b, stride):
    """Loop reference for ConvTranspose1d + ReLU (PyTorch semantics)."""
    x = np.asarray(x, dtype=np.float64)
    w = np.asarray(w, dtype=np.float64)
    b = np.asarray(b, dtype=np.float64)
    N, C_in, L_in = x.shape
    _, C_out, K = w.shape
    L_out = (L_in - 1) * stride + K
    y = np.zeros((N, C_out, L_out), dtype=np.float64)
    for n in range(N):
        for ci in range(C_in):
            for i in range(L_in):
                for co in range(C_out):
                    for k in range(K):
                        y[n, co, i * stride + k] += x[n, ci, i] * w[ci, co, k]
    y += b[None, :, None]
    return np.maximum(y, 0.0)


if __name__ == "__main__":
    key = jax.random.PRNGKey(0)

    def run_case(N, C_in, L_in, C_out, K, stride, case_key, *, compute_dtype,
                 rtol, atol):
        kx, kw, kb = jax.random.split(case_key, 3)
        x = jax.random.normal(kx, (N, C_in, L_in), dtype=jnp.float32)
        bound = 1.0 / np.sqrt(C_in * K)   # PyTorch-style uniform init bound
        weight = jax.random.uniform(kw, (C_in, C_out, K), minval=-bound,
                                    maxval=bound, dtype=jnp.float32)
        bias = jax.random.uniform(kb, (C_out,), minval=-bound, maxval=bound,
                                  dtype=jnp.float32)
        out = jax.block_until_ready(
            g_addition(x, weight, bias, stride=stride, compute_dtype=compute_dtype))
        ref = _reference_numpy(np.asarray(x), np.asarray(weight),
                               np.asarray(bias), stride)
        np.testing.assert_allclose(np.asarray(out), ref, rtol=rtol, atol=atol)

    k1, k2, k3 = jax.random.split(key, 3)
    # G_addition(in_channels=4, out_channels=8, kernel_size=4, stride=2, act_function=nn.ReLU())
    # Exact path (f32 compute).
    run_case(2, 4, 8, 8, 4, 2, k1, compute_dtype=jnp.float32, rtol=1e-4, atol=1e-4)
    # K not a multiple of stride (exercises zero-padded taps / unequal phases).
    run_case(2, 4, 8, 8, 3, 2, k2, compute_dtype=jnp.float32, rtol=1e-4, atol=1e-4)
    # Default bf16 compute path (loose tolerance vs f64 reference).
    run_case(2, 4, 16, 8, 4, 2, k3, compute_dtype=jnp.bfloat16, rtol=3e-2, atol=3e-2)

    print("KERNEL_OK")
</pallas_src>

<mosaic_0001>
module attributes {stable_mosaic.version = 11 : i64} {
  func.func @g_addition_kernel(%arg0: i32, %arg1: i32, %arg2: memref<1x8x128xf32, #tpu.memory_space<vmem>>, %arg3: memref<16x8xf32, #tpu.memory_space<vmem>>, %arg4: memref<16x1xf32, #tpu.memory_space<vmem>>, %arg5: memref<1x16x128xf32, #tpu.memory_space<vmem>>) attributes {dimension_semantics = [#tpu.dimension_semantics<parallel>, #tpu.dimension_semantics<parallel>], iteration_bounds = array<i64: 2, 1>, scalar_prefetch = 0 : i64, scratch_operands = 0 : i64, tpu.core_type = #tpu.core_type<tc>, window_params = [{transform_indices = @transform_0, window_bounds = array<i64: 1, 8, 128>}, {pipeline_mode = #tpu.pipeline_mode<synchronous>, transform_indices = @transform_1, window_bounds = array<i64: 16, 8>}, {pipeline_mode = #tpu.pipeline_mode<synchronous>, transform_indices = @transform_2, window_bounds = array<i64: 16, 1>}, {transform_indices = @transform_3, window_bounds = array<i64: 1, 16, 128>}]} {
    %c0 = arith.constant 0 : index
    %c0_0 = arith.constant 0 : index
    %0 = vector.load %arg3[%c0, %c0_0] : memref<16x8xf32, #tpu.memory_space<vmem>>, vector<16x8xf32>
    %c0_1 = arith.constant 0 : index
    %c0_2 = arith.constant 0 : index
    %c0_3 = arith.constant 0 : index
    %1 = vector.load %arg2[%c0_1, %c0_2, %c0_3] : memref<1x8x128xf32, #tpu.memory_space<vmem>>, vector<1x8x128xf32>
    %2 = vector.shape_cast %1 : vector<1x8x128xf32> to vector<8x128xf32>
    %cst = arith.constant dense<0.000000e+00> : vector<16x128xf32>
    %3 = tpu.matmul %0, %2, %cst {dimension_numbers = #tpu.dot_dimension_numbers<[1], [0], [0], [1], [0, 0, 1, 1], [], []>} : vector<16x8xf32>, vector<8x128xf32>, vector<16x128xf32> -> vector<16x128xf32>
    %c0_4 = arith.constant 0 : index
    %c0_5 = arith.constant 0 : index
    %4 = vector.load %arg4[%c0_4, %c0_5] : memref<16x1xf32, #tpu.memory_space<vmem>>, vector<16x1xf32>
    %5 = vector.broadcast %4 : vector<16x1xf32> to vector<16x128xf32>
    %6 = arith.addf %3, %5 : vector<16x128xf32>
    %cst_6 = arith.constant 0.000000e+00 : f32
    %7 = vector.broadcast %cst_6 : f32 to vector<16x128xf32>
    %8 = arith.maximumf %6, %7 : vector<16x128xf32>
    %c0_7 = arith.constant 0 : index
    %c0_8 = arith.constant 0 : index
    %c0_9 = arith.constant 0 : index
    %9 = vector.load %arg5[%c0_7, %c0_8, %c0_9] : memref<1x16x128xf32, #tpu.memory_space<vmem>>, vector<1x16x128xf32>
    %10 = vector.shape_cast %9 : vector<1x16x128xf32> to vector<16x128xf32>
    %11 = vector.shape_cast %8 : vector<16x128xf32> to vector<1x16x128xf32>
    tpu.vector_store %arg5[%c0_7, %c0_8, %c0_9], %11 {strides = array<i32>} : memref<1x16x128xf32, #tpu.memory_space<vmem>>, vector<1x16x128xf32>,
    return
  }
  func.func @transform_0(%arg0: i32, %arg1: i32) -> (i32, i32, i32) {
    %c0_i32 = arith.constant 0 : i32
    %c0_i32_0 = arith.constant 0 : i32
    return %arg0, %c0_i32, %arg1 : i32, i32, i32
  }
  func.func @transform_1(%arg0: i32, %arg1: i32) -> (i32, i32) {
    %c0_i32 = arith.constant 0 : i32
    %c0_i32_0 = arith.constant 0 : i32
    %c0_i32_1 = arith.constant 0 : i32
    return %c0_i32, %c0_i32_0 : i32, i32
  }
  func.func @transform_2(%arg0: i32, %arg1: i32) -> (i32, i32) {
    %c0_i32 = arith.constant 0 : i32
    %c0_i32_0 = arith.constant 0 : i32
    %c0_i32_1 = arith.constant 0 : i32
    return %c0_i32, %c0_i32_0 : i32, i32
  }
  func.func @transform_3(%arg0: i32, %arg1: i32) -> (i32, i32, i32) {
    %c0_i32 = arith.constant 0 : i32
    %c0_i32_0 = arith.constant 0 : i32
    return %arg0, %c0_i32, %arg1 : i32, i32, i32
  }
}

</mosaic_0001>

<llo_original>
// kernel: tpu_custom_call.1
$region0: #{tpu_custom_call.1}
  #allocation0 [shape = 'u32[]', space=smem, size = 0x4, offset = 0x4, fixed_abs, tag = 'smem constant byte address 0x4 - core index']
  #allocation1 [shape = 'u32[144,128]{1,0:T(1,128)}', space=vmem, size = 0x12000, scoped, tag = 'internal scratch']
  %s0 = inlined_call_operand.vmem [shape: f32[2,8,128], index: 0, kind: input, shape index: {}]
  %s1 = inlined_call_operand.vmem [shape: f32[16,8], index: 1, kind: input, shape index: {}]
  %s2 = inlined_call_operand.vmem [shape: f32[16,1], index: 2, kind: input, shape index: {}]
  %s3 = inlined_call_operand.hbm [shape: f32[2,16,128], index: 3, kind: output, shape index: {}]
  %s4 = sld [smem:[#allocation0]]
  $region45: #{tpu_custom_call.1} parent=0
    _
  %s6 = ssub.s32 1, %s4
  %s7 = scalar_select 0, %s6, %s4
  $region1: #{tpu_custom_call.1} parent=0
    #allocation2 [shape = 'u8[16384]{0}', space=vmem, size = 0x4000, scoped, tag = 'output window, operand 0']
    #allocation3 [shape = 's32[2]{0}', space=sflag, size = 0x8, scoped, tag = 'scoped memory for tpu_custom_call.1']
    %8 = vsyncpa [#allocation3], 0
    %s9 = scalar_lea.sflag [#allocation3], 1
    %10 = vsyncpa %s9, 0
    loop: start=0, step=1, limit=4
    $region2: #{tpu_custom_call.1} parent=1 // loop_pre_header
      _
    $region3: #{tpu_custom_call.1} parent=1 // loop_header
      %s12 = sphi 0, %s16
      %p13 = scmp.ge.s32.totalorder %s12, 4
      %s19 = sphi 0, %s31
      %s20 = sphi 0, %s27
      %s21 = sphi 0, %s19
      %s22 = sphi 0, %s20
      %s23 = sphi 0, %s21
      %s24 = sphi 0, %s22
      %s36 = sphi 0, %s38
      %s39 = sphi 0, %s36
      %s40 = sphi 0, %s39
      %s56 = sphi 0, %s40
      %s60 = sphi 0, %s60
      %s62 = sphi 0, %s60
      %s63 = sphi 0, %s62
      %s77 = sphi 0, %s63
      %s81 = sphi 0, %s81
      %s83 = sphi 0, %s81
      %s84 = sphi 0, %s83
      %s98 = sphi 0, %s84
      %s106 = sphi 0, %s108
      %s109 = sphi 0, %s106
      %s110 = sphi 0, %s109
      %s126 = sphi 0, %s110
    $region4: #{tpu_custom_call.1} parent=1 // loop_header_branch
      %15 = sbr.rel (%p13) target = $region8
    $region5: #{tpu_custom_call.1} parent=1 // loop_body
      %s17 = ssub.s32 %s12, 1
      %s18 = ssub.s32 %s12, 2
      %s25 = sadd.s32 1, %s20
      %p26 = scmp.ge.s32.totalorder %s25, 1
      %s27 = scalar_select %p26, 0, %s25
      %s28 = sadd.s32 1, %s19
      %s29 = scalar_select %p26, %s28, %s19
      %p30 = scmp.ge.s32.totalorder %s29, 2
      %s31 = scalar_select %p30, 0, %s29
      %s32 = ssub.s32 %s19, %s31
      %s33 = ssub.s32 %s20, %s27
      %s34 = sor.u32 %s32, %s33
      %p35 = scmp.eq.s32.totalorder %s34, 0
      %s37 = sadd.s32 %s36, 1
      %s38 = scalar_select %p35, %s36, %s37
      %p41 = pneg %p35
      %p42 = scmp.eq.s32.totalorder %s12, 1
      %p43 = por %p41, %p42
      %p44 = scmp.ne.s32.totalorder %s36, %s39
      %p45 = scmp.eq.s32.totalorder %s12, 0
      %p46 = por %p44, %p45
      %p47 = scmp.ne.s32.totalorder %s36, %s39
      %p48 = scmp.eq.s32.totalorder %s17, 1
      %p49 = por %p47, %p48
      %p50 = scmp.ne.s32.totalorder %s39, %s40
      %p51 = scmp.eq.s32.totalorder %s17, 0
      %p52 = por %p50, %p51
      %p53 = scmp.ne.s32.totalorder %s39, %s40
      %p54 = scmp.eq.s32.totalorder %s18, 1
      %p55 = por %p53, %p54
      %p57 = scmp.ne.s32.totalorder %s40, %s56
      %p58 = scmp.eq.s32.totalorder %s18, 0
      %p59 = por %p57, %p58
      %s61 = sadd.s32 %s60, 1
      %p64 = scmp.eq.s32.totalorder %s12, 1
      %p65 = scmp.ne.s32.totalorder %s60, %s62
      %p66 = scmp.eq.s32.totalorder %s12, 0
      %p67 = por %p65, %p66
      %p68 = scmp.ne.s32.totalorder %s60, %s62
      %p69 = scmp.eq.s32.totalorder %s17, 1
      %p70 = por %p68, %p69
      %p71 = scmp.ne.s32.totalorder %s62, %s63
      %p72 = scmp.eq.s32.totalorder %s17, 0
      %p73 = por %p71, %p72
      %p74 = scmp.ne.s32.totalorder %s62, %s63
      %p75 = scmp.eq.s32.totalorder %s18, 1
      %p76 = por %p74, %p75
      %p78 = scmp.ne.s32.totalorder %s63, %s77
      %p79 = scmp.eq.s32.totalorder %s18, 0
      %p80 = por %p78, %p79
      %s82 = sadd.s32 %s81, 1
      %p85 = scmp.eq.s32.totalorder %s12, 1
      %p86 = scmp.ne.s32.totalorder %s81, %s83
      %p87 = scmp.eq.s32.totalorder %s12, 0
      %p88 = por %p86, %p87
      %p89 = scmp.ne.s32.totalorder %s81, %s83
      %p90 = scmp.eq.s32.totalorder %s17, 1
      %p91 = por %p89, %p90
      %p92 = scmp.ne.s32.totalorder %s83, %s84
      %p93 = scmp.eq.s32.totalorder %s17, 0
      %p94 = por %p92, %p93
      %p95 = scmp.ne.s32.totalorder %s83, %s84
      %p96 = scmp.eq.s32.totalorder %s18, 1
      %p97 = por %p95, %p96
      %p99 = scmp.ne.s32.totalorder %s84, %s98
      %p100 = scmp.eq.s32.totalorder %s18, 0
      %p101 = por %p99, %p100
      %s102 = ssub.s32 %s19, %s31
      %s103 = ssub.s32 %s20, %s27
      %s104 = sor.u32 %s102, %s103
      %p105 = scmp.eq.s32.totalorder %s104, 0
      %s107 = sadd.s32 %s106, 1
      %s108 = scalar_select %p105, %s106, %s107
      %p111 = pneg %p105
      %p112 = scmp.eq.s32.totalorder %s12, 1
      %p113 = por %p111, %p112
      %p114 = scmp.ne.s32.totalorder %s106, %s109
      %p115 = scmp.eq.s32.totalorder %s12, 0
      %p116 = por %p114, %p115
      %p117 = scmp.ne.s32.totalorder %s106, %s109
      %p118 = scmp.eq.s32.totalorder %s17, 1
      %p119 = por %p117, %p118
      %p120 = scmp.ne.s32.totalorder %s109, %s110
      %p121 = scmp.eq.s32.totalorder %s17, 0
      %p122 = por %p120, %p121
      %p123 = scmp.ne.s32.totalorder %s109, %s110
      %p124 = scmp.eq.s32.totalorder %s18, 1
      %p125 = por %p123, %p124
      %p127 = scmp.ne.s32.totalorder %s110, %s126
      %p128 = scmp.eq.s32.totalorder %s18, 0
      %p129 = por %p127, %p128
      %p130 = scmp.le.s32.totalorder 1, %s12
      %p131 = scmp.lt.s32.totalorder %s12, 3
      %p132 = pnand %p130, %p131
      %p133 = pneg %p132
      // Predicated region
      $region9: #{tpu_custom_call.1} parent=5 // pred_check
        _
      $region10: #{tpu_custom_call.1} parent=5 // pred_check_branch
        %135 = sbr.rel (%p132) target = $region12
      $region11: #{tpu_custom_call.1} parent=5 // pred_region
        %s136 = ssub.s32 %s12, 1
        // Predicated region
        $region13: #{tpu_custom_call.1} parent=11 // pred_check
          %p137 = pneg %p73
        $region14: #{tpu_custom_call.1} parent=11 // pred_check_branch
          %139 = sbr.rel (%p137) target = $region16
        $region15: #{tpu_custom_call.1} parent=11 // pred_region
          _
        $region16: #{tpu_custom_call.1} parent=11 // pred_fallthru
          _
        // Predicated region
        $region17: #{tpu_custom_call.1} parent=11 // pred_check
          %p140 = pneg %p94
        $region18: #{tpu_custom_call.1} parent=11 // pred_check_branch
          %142 = sbr.rel (%p140) target = $region20
        $region19: #{tpu_custom_call.1} parent=11 // pred_region
          _
        $region20: #{tpu_custom_call.1} parent=11 // pred_fallthru
          _
      $region12: #{tpu_custom_call.1} parent=5 // pred_fallthru
        _
      %p143 = scmp.lt.s32.totalorder %s12, 2
      // Predicated region
      $region21: #{tpu_custom_call.1} parent=5 // pred_check
        %p144 = pneg %p143
      $region22: #{tpu_custom_call.1} parent=5 // pred_check_branch
        %146 = sbr.rel (%p144) target = $region24
      $region23: #{tpu_custom_call.1} parent=5 // pred_region
        // Predicated region
        $region25: #{tpu_custom_call.1} parent=23 // pred_check
          %p147 = pneg %p46
        $region26: #{tpu_custom_call.1} parent=23 // pred_check_branch
          %149 = sbr.rel (%p147) target = $region28
        $region27: #{tpu_custom_call.1} parent=23 // pred_region
          %p150 = scmp.lt.s32.totalorder %s19, 1
          %s151 = scalar_select %p150, %s19, 1
          %p152 = scmp.lt.s32.totalorder %s20, 0
          %s153 = scalar_select %p152, %s20, 0
          %s154 = sadd.s32 %s153, %s151
          %s155 = smul.addr %s154, 8
          %s156 = scalar_lea.vmem %s0, %s155
        $region28: #{tpu_custom_call.1} parent=23 // pred_fallthru
          _
      $region24: #{tpu_custom_call.1} parent=5 // pred_fallthru
        _
      %p157 = scmp.le.s32.totalorder 1, %s12
      %p158 = scmp.lt.s32.totalorder %s12, 3
      %p159 = pnand %p157, %p158
      %p160 = pneg %p159
      // Predicated region
      $region29: #{tpu_custom_call.1} parent=5 // pred_check
        _
      $region30: #{tpu_custom_call.1} parent=5 // pred_check_branch
        %162 = sbr.rel (%p159) target = $region32
      $region31: #{tpu_custom_call.1} parent=5 // pred_region
        %s163 = ssub.s32 %s12, 1
        %p164 = scmp.lt.s32.totalorder %s21, 1
        %s165 = scalar_select %p164, %s21, 1
        %p166 = scmp.lt.s32.totalorder %s22, 0
        %s167 = scalar_select %p166, %s22, 0
        %s168 = sadd.s32 %s167, %s165
        %s169 = smul.addr %s168, 8
        %s170 = scalar_lea.vmem %s0, %s169
        %p171 = pneg %p52
        %p172 = pneg %p49
        %p173 = pneg %p73
        %p174 = pneg %p70
        %p175 = pneg %p94
        %p176 = pneg %p91
        %p177 = pneg %p122
        %p178 = pneg %p119
        %s179 = sand.u32 %s109, 1
        %s180 = scalar_lea.sflag [#allocation3], %s179
        %s181 = sand.u32 %s109, 1
        %s182 = smul.addr %s181, 16
        %s183 = scalar_lea.vmem [#allocation2], %s182
        %p184 = scmp.lt.s32.totalorder %s21, 1
        %s185 = scalar_select %p184, %s21, 1
        %p186 = scmp.lt.s32.totalorder %s22, 0
        %s187 = scalar_select %p186, %s22, 0
        %s188 = sadd.s32 %s187, %s185
        %s189 = smul.addr %s188, 8
        %s190 = scalar_lea.vmem %s0, %s189
        %v191 = vld [vmem:[%s1] sm:$0xff]
        %v192 = vld [vmem:[%s1 + $0x8] sm:$0xff]
        %v193 = vld [vmem:[%s190] sm:$0xff]
        %v194 = vld [vmem:[%s2] sm:$0xff]
        %v195 = vld [vmem:[%s2 + $0x8] sm:$0xff]
        %197 = vset.pattern.permute.xlu0 0
        %198 = vperm.xlu0 %197, %v194
        %v199 = vpop.permute.xlu0 %198
        %202 = vset.pattern.permute.xlu0 0
        %203 = vperm.xlu0 %202, %v195
        %v204 = vpop.permute.xlu0 %203
        %vm206 = vcmask 64512
        %v208 = vsel %vm206, %v191, 0
        %v211 = vsel %vm206, %v192, 0
        %213 = vmatprep.subr.mxu0 0.0
        %214 = vmatpush1.msra.mxu0 %v193
        %215 = vmatprep.subr.mxu0 0.0
        %216 = vmatpush1.msra.mxu0 0.0
        %217 = vmatprep.subr.mxu0 0.0
        %218 = vmatpush1.msra.mxu0 0.0
        %219 = vmatprep.subr.mxu0 0.0
        %220 = vmatpush1.msra.mxu0 0.0
        %221 = vmatprep.subr.mxu0 0.0
        %222 = vmatpush1.msra.mxu0 0.0
        %223 = vmatprep.subr.mxu0 0.0
        %224 = vmatpush1.msra.mxu0 0.0
        %225 = vmatprep.subr.mxu0 0.0
        %226 = vmatpush1.msra.mxu0 0.0
        %227 = vmatprep.subr.mxu0 0.0
        %228 = vmatpush1.msra.mxu0 0.0
        %229 = vmatprep.subr.mxu0 0.0
        %230 = vmatpush1.msra.mxu0 0.0
        %231 = vmatprep.subr.mxu0 0.0
        %232 = vmatpush1.msra.mxu0 0.0
        %233 = vmatprep.subr.mxu0 0.0
        %234 = vmatpush1.msra.mxu0 0.0
        %235 = vmatprep.subr.mxu0 0.0
        %236 = vmatpush1.msra.mxu0 0.0
        %237 = vmatprep.subr.mxu0 0.0
        %238 = vmatpush1.msra.mxu0 0.0
        %239 = vmatprep.subr.mxu0 0.0
        %240 = vmatpush1.msra.mxu0 0.0
        %241 = vmatprep.subr.mxu0 0.0
        %242 = vmatpush1.msra.mxu0 0.0
        %243 = vmatprep.subr.mxu0 0.0
        %244 = vmatpush1.msra.mxu0 0.0
        %245 = vmatprep.subr.mxu0 0.0
        %246 = vmatpush1.msra.mxu0 0.0
        %247 = vmatprep.subr.mxu0 0.0
        %248 = vmatpush1.msra.mxu0 0.0
        %249 = vmatprep.subr.mxu0 0.0
        %250 = vmatpush1.msra.mxu0 0.0
        %251 = vmatprep.subr.mxu0 0.0
        %252 = vmatpush1.msra.mxu0 0.0
        %253 = vmatprep.subr.mxu0 0.0
        %254 = vmatpush1.msra.mxu0 0.0
        %255 = vmatprep.subr.mxu0 0.0
        %256 = vmatpush1.msra.mxu0 0.0
        %257 = vmatprep.subr.mxu0 0.0
        %258 = vmatpush1.msra.mxu0 0.0
        %259 = vmatprep.subr.mxu0 0.0
        %260 = vmatpush1.msra.mxu0 0.0
        %261 = vmatprep.subr.mxu0 0.0
        %262 = vmatpush1.msra.mxu0 0.0
        %263 = vmatprep.subr.mxu0 0.0
        %264 = vmatpush1.msra.mxu0 0.0
        %265 = vmatprep.subr.mxu0 0.0
        %266 = vmatpush1.msra.mxu0 0.0
        %267 = vmatprep.subr.mxu0 0.0
        %268 = vmatpush1.msra.mxu0 0.0
        %269 = vmatprep.subr.mxu0 0.0
        %270 = vmatpush1.msra.mxu0 0.0
        %271 = vmatprep.subr.mxu0 0.0
        %272 = vmatpush1.msra.mxu0 0.0
        %273 = vmatprep.subr.mxu0 0.0
        %274 = vmatpush1.msra.mxu0 0.0
        %275 = vmatprep.subr.mxu0 0.0
        %276 = vmatpush1.msra.mxu0 0.0
        %277 = vmatprep.mubr.f32.mxu0 0.0
        %278 = vmatmul.mubr.f32.gmra.mrb[0].mxu0 %v208
        %v279 = vpop.f32.mrb[0].mxu0
        %v280 = vadd.f32 %v199, %v279
        %v281 = vpop.f32.mrb[0].mxu0
        %282 = vmatprep.mubr.f32.mxu0 0.0
        %283 = vmatmul.mubr.f32.gmra.mrb[0].mxu0 %v211
        %v284 = vpop.f32.mrb[0].mxu0
        %v285 = vadd.f32 %v204, %v284
        %v286 = vpop.f32.mrb[0].mxu0
        %287 = vdwg.mxu0
        %v288 = vmax.f32 %v280, 0.0
        %v289 = vmax.f32 %v285, 0.0
        %290 = vst [vmem:[%s183] sm:$0xff] %v288
        %291 = vst [vmem:[%s183 + $0x8] sm:$0xff] %v289
        %s292 = sand.u32 %s109, 1
        %s293 = scalar_lea.sflag [#allocation3], %s292
        %s294 = sand.u32 %s109, 1
        %s295 = smul.addr %s294, 16
        %s296 = scalar_lea.vmem [#allocation2], %s295
        // Predicated region
        $region33: #{tpu_custom_call.1} parent=31 // pred_check
          %p297 = pneg %p119
        $region34: #{tpu_custom_call.1} parent=31 // pred_check_branch
          %299 = sbr.rel (%p297) target = $region36
        $region35: #{tpu_custom_call.1} parent=31 // pred_region
          %s301 = ssub.s32 256, 256
          %302 = vsyncadd %s293, %s301
          %s303 = smul.addr %s21, 2
          %s304 = sadd.s32 %s22, %s303
          %s305 = smul.addr %s304, 128
          %s306 = scalar_lea.hbm %s3, %s305
          %s307 = sshll.u32 %s296, 4
          %s308 = int_to_ptr.vmem [resolvable:$true] %s307
          %313 = dma.vmem_to_hbm [thread:$0]  %s308, 256, %s306, %s293, 128, 128, 8
        $region36: #{tpu_custom_call.1} parent=31 // pred_fallthru
          _
      $region32: #{tpu_custom_call.1} parent=5 // pred_fallthru
        _
      %p314 = scmp.le.s32.totalorder 2, %s12
      // Predicated region
      $region37: #{tpu_custom_call.1} parent=5 // pred_check
        %p315 = pneg %p314
      $region38: #{tpu_custom_call.1} parent=5 // pred_check_branch
        %317 = sbr.rel (%p315) target = $region40
      $region39: #{tpu_custom_call.1} parent=5 // pred_region
        %s318 = ssub.s32 %s12, 2
        // Predicated region
        $region41: #{tpu_custom_call.1} parent=39 // pred_check
          %p319 = pneg %p125
        $region42: #{tpu_custom_call.1} parent=39 // pred_check_branch
          %321 = sbr.rel (%p319) target = $region44
        $region43: #{tpu_custom_call.1} parent=39 // pred_region
          %s322 = sand.u32 %s110, 1
          %s323 = scalar_lea.sflag [#allocation3], %s322
          %s324 = sand.u32 %s110, 1
          %s325 = smul.addr %s324, 16
          %s326 = scalar_lea.vmem [#allocation2], %s325
          %327 = dma.done %s323, 256
        $region44: #{tpu_custom_call.1} parent=39 // pred_fallthru
          _
      $region40: #{tpu_custom_call.1} parent=5 // pred_fallthru
        _
    $region6: #{tpu_custom_call.1} parent=1 // loop_footer
      %s16 = sadd.s32 1, %s12
    $region7: #{tpu_custom_call.1} parent=1 // loop_footer_branch
      %11 = sbr.rel target = $region3
    $region8: #{tpu_custom_call.1} parent=1 // loop_exit
      _
    %328 = vsyncpa [#allocation3], 1
    %s329 = scalar_lea.sflag [#allocation3], 1
    %330 = vsyncpa %s329, 1

</llo_original>
